<compile_context>
chip_gen: v6e
topology: v6e:2x2x1
jax: 0.10.0
libtpu: 0.0.40
codegen_flags: <defaults>
</compile_context>

<pallas_src>
import functools

import jax
import jax.numpy as jnp
from jax import lax
from jax.experimental import pallas as pl
from jax.experimental.pallas import tpu as pltpu

_EPS = 1e-6


# ------------------------------- kernels ----------------------------------- #

def _normalize_rows_kernel(x_ref, o_ref):
    """Fast path: each row of the (TB, CHW) tile is one full sample."""
    x = x_ref[...]
    # Exact per-row min/max in the native dtype (picks real elements); only the
    # per-row scalars are promoted to f32 for the arithmetic (matches reference).
    mn = jnp.min(x, axis=-1, keepdims=True).astype(jnp.float32)
    mx = jnp.max(x, axis=-1, keepdims=True).astype(jnp.float32)
    inv = pl.reciprocal(mx - mn + _EPS)  # exact; one per row
    # Garbage rows of a partial boundary block normalize to garbage but their
    # writes are dropped by Pallas, so they never reach HBM.
    o_ref[...] = ((x.astype(jnp.float32) - mn) * inv).astype(o_ref.dtype)


def _row_stats_kernel(x_ref, min_ref, max_ref, *, chw, ck):
    """Chunked pass 1: running per-row min/max over CHW chunks."""
    j = pl.program_id(1)

    @pl.when(j == 0)
    def _():
        min_ref[...] = jnp.full_like(min_ref, jnp.inf)
        max_ref[...] = jnp.full_like(max_ref, -jnp.inf)

    x = x_ref[...].astype(jnp.float32)
    # Mask the lane tail of a partial last chunk (OOB lanes hold undefined data).
    col = lax.broadcasted_iota(jnp.int32, x.shape, dimension=x.ndim - 1)
    valid = (j * ck + col) < chw
    x_min = jnp.where(valid, x, jnp.inf)
    x_max = jnp.where(valid, x, -jnp.inf)
    min_ref[...] = jnp.minimum(min_ref[...], jnp.min(x_min, axis=-1, keepdims=True))
    max_ref[...] = jnp.maximum(max_ref[...], jnp.max(x_max, axis=-1, keepdims=True))


def _apply_stats_kernel(x_ref, min_ref, max_ref, o_ref):
    """Chunked pass 2: normalize each chunk with the precomputed per-row stats."""
    mn = min_ref[...]
    mx = max_ref[...]
    inv = pl.reciprocal(mx - mn + _EPS)
    o_ref[...] = ((x_ref[...].astype(jnp.float32) - mn) * inv).astype(o_ref.dtype)


# ------------------------------- wrapper ------------------------------------ #

def _vmem_limit_bytes():
    cap = 64 * 1024 * 1024  # conservative default = v7x per-TensorCore VMEM
    try:
        cap = int(getattr(pltpu.get_tpu_info(), "vmem_capacity_bytes", cap))
    except Exception:
        pass
    cap = min(max(cap, 48 * 1024 * 1024), 128 * 1024 * 1024)
    # Leave headroom under physical VMEM: ~48 MiB on v7x, ~96 MiB on v5e/v6e.
    return (3 * cap) // 4


def normalize_layer(x, *, tile_bytes_override=None):
    """Pallas equivalent of NormalizeLayer.forward for NCHW input."""
    n, c, h, w = x.shape
    chw = c * h * w
    itemsize = jnp.dtype(x.dtype).itemsize
    x2d = x.reshape(n, chw)  # contiguous reshape: no HBM copy, no padding

    vmem_limit = _vmem_limit_bytes()
    # Per-tile footprint: 2x in + 2x out double buffers + ~2 f32-sized temps.
    denom = 4 + 2 * max(1, 4 // itemsize)
    target_tile_bytes = max(1 << 20, (vmem_limit - (2 << 20)) // denom)
    if tile_bytes_override is not None:
        target_tile_bytes = int(tile_bytes_override)

    pack = 8 * max(1, 4 // itemsize)  # packed sublane rows: 8 f32 / 16 bf16 / 32 int8
    row_bytes = chw * itemsize
    rows_fit = target_tile_bytes // max(1, row_bytes)

    # ---------------- Fast path: a row group fits in one VMEM tile. ----------
    if rows_fit >= min(n, pack):
        if n <= pack:
            tb = n  # block dim == full batch dim (any n allowed)
        else:
            tb = min(int(rows_fit), n)
            if tb >= n:
                # Whole batch fits one tile: use >=2 steps so input/output DMAs
                # pipeline and both v7x TensorCores get a block.
                tb = pl.cdiv(n, 2)
            tb = max(pack, (tb // pack) * pack)  # packed-sublane aligned
        grid = (pl.cdiv(n, tb),)

        out2d = pl.pallas_call(
            _normalize_rows_kernel,
            out_shape=jax.ShapeDtypeStruct((n, chw), x.dtype),
            grid_spec=pltpu.PrefetchScalarGridSpec(
                num_scalar_prefetch=0,
                grid=grid,
                in_specs=[pl.BlockSpec((tb, chw), lambda i: (i, 0))],
                out_specs=pl.BlockSpec((tb, chw), lambda i: (i, 0)),
            ),
            compiler_params=pltpu.CompilerParams(
                dimension_semantics=("parallel",),
                vmem_limit_bytes=vmem_limit,
            ),
        )(x2d)
        return out2d.reshape(n, c, h, w)

    # ------------- Chunked fallback: samples too large for one tile. ---------
    tb = n if n <= pack else pack
    ck = (target_tile_bytes // max(1, tb * itemsize)) // 128 * 128
    ck = max(128, ck)
    ck = min(ck, (chw // 128) * 128)  # chw >> 128 whenever this path triggers
    gi, gj = pl.cdiv(n, tb), pl.cdiv(chw, ck)

    stats_kernel = functools.partial(_row_stats_kernel, chw=chw, ck=ck)
    mins, maxs = pl.pallas_call(
        stats_kernel,
        out_shape=(jax.ShapeDtypeStruct((n, 1), jnp.float32),
                   jax.ShapeDtypeStruct((n, 1), jnp.float32)),
        grid_spec=pltpu.PrefetchScalarGridSpec(
            num_scalar_prefetch=0,
            grid=(gi, gj),
            in_specs=[pl.BlockSpec((tb, ck), lambda i, j: (i, j))],
            out_specs=(pl.BlockSpec((tb, 1), lambda i, j: (i, 0)),
                       pl.BlockSpec((tb, 1), lambda i, j: (i, 0))),
        ),
        compiler_params=pltpu.CompilerParams(
            dimension_semantics=("parallel", "arbitrary"),
            vmem_limit_bytes=vmem_limit,
        ),
    )(x2d)

    out2d = pl.pallas_call(
        _apply_stats_kernel,
        out_shape=jax.ShapeDtypeStruct((n, chw), x.dtype),
        grid_spec=pltpu.PrefetchScalarGridSpec(
            num_scalar_prefetch=0,
            grid=(gi, gj),
            in_specs=[pl.BlockSpec((tb, ck), lambda i, j: (i, j)),
                      pl.BlockSpec((tb, 1), lambda i, j: (i, 0)),
                      pl.BlockSpec((tb, 1), lambda i, j: (i, 0))],
            out_specs=pl.BlockSpec((tb, ck), lambda i, j: (i, j)),
        ),
        compiler_params=pltpu.CompilerParams(
            dimension_semantics=("parallel", "parallel"),
            vmem_limit_bytes=vmem_limit,
        ),
    )(x2d, mins, maxs)
    return out2d.reshape(n, c, h, w)


def normalize_ref(x):
    min_val = jnp.min(x, axis=(1, 2, 3), keepdims=True)
    max_val = jnp.max(x, axis=(1, 2, 3), keepdims=True)
    return (x - min_val) / (max_val - min_val + _EPS)


if __name__ == "__main__":
    key = jax.random.PRNGKey(0)

    # 1) Primary small case matching the module spec (fast path, tb == n).
    x = jax.random.normal(key, (2, 4, 16, 16), dtype=jnp.float32)
    out = jax.block_until_ready(normalize_layer(x))
    ref = normalize_ref(x)
    assert out.shape == x.shape
    assert jnp.allclose(out, ref, atol=1e-5, rtol=1e-5)

    # 2) Multi-block fast path (tb multiple of 8, several grid steps).
    x2 = jax.random.normal(jax.random.PRNGKey(1), (32, 4, 16, 16), dtype=jnp.float32)
    out2 = jax.block_until_ready(normalize_layer(x2))
    assert jnp.allclose(out2, normalize_ref(x2), atol=1e-5, rtol=1e-5)

    # 3) Chunked fallback (forced via a tiny tile budget): non-128-multiple CHW
    #    exercises the iota-masked tail chunk.
    x3 = jax.random.normal(jax.random.PRNGKey(2), (4, 3, 20, 20), dtype=jnp.float32)
    out3 = jax.block_until_ready(normalize_layer(x3, tile_bytes_override=2048))
    assert jnp.allclose(out3, normalize_ref(x3), atol=1e-5, rtol=1e-5)

    # 4) Chunked fallback with a partial batch block (n not a multiple of 8).
    x4 = jax.random.normal(jax.random.PRNGKey(3), (10, 3, 20, 20), dtype=jnp.float32)
    out4 = jax.block_until_ready(normalize_layer(x4, tile_bytes_override=4096))
    assert jnp.allclose(out4, normalize_ref(x4), atol=1e-5, rtol=1e-5)

    print("KERNEL_OK")
</pallas_src>

<mosaic_0001>
module attributes {stable_mosaic.version = 11 : i64} {
  func.func @_normalize_rows_kernel(%arg0: i32, %arg1: memref<2x1024xf32, #tpu.memory_space<vmem>>, %arg2: memref<2x1024xf32, #tpu.memory_space<vmem>>) attributes {dimension_semantics = [#tpu.dimension_semantics<parallel>], iteration_bounds = array<i64: 1>, scalar_prefetch = 0 : i64, scratch_operands = 0 : i64, tpu.core_type = #tpu.core_type<tc>, window_params = [{transform_indices = @transform_0, window_bounds = array<i64: 2, 1024>}, {transform_indices = @transform_1, window_bounds = array<i64: 2, 1024>}]} {
    %c0 = arith.constant 0 : index
    %c0_0 = arith.constant 0 : index
    %0 = vector.load %arg1[%c0, %c0_0] : memref<2x1024xf32, #tpu.memory_space<vmem>>, vector<2x1024xf32>
    %cst = arith.constant dense<0x7F800000> : vector<2xf32>
    %1 = vector.multi_reduction <minimumf>, %0, %cst [1] : vector<2x1024xf32> to vector<2xf32>
    %2 = vector.shape_cast %1 : vector<2xf32> to vector<2x1xf32>
    %cst_1 = arith.constant dense<0xFF800000> : vector<2xf32>
    %3 = vector.multi_reduction <maximumf>, %0, %cst_1 [1] : vector<2x1024xf32> to vector<2xf32>
    %4 = vector.shape_cast %3 : vector<2xf32> to vector<2x1xf32>
    %5 = arith.subf %4, %2 : vector<2x1xf32>
    %cst_2 = arith.constant 9.99999997E-7 : f32
    %6 = vector.broadcast %cst_2 : f32 to vector<2x1xf32>
    %7 = arith.addf %5, %6 : vector<2x1xf32>
    %8 = tpu.reciprocal %7 : vector<2x1xf32> -> vector<2x1xf32>
    %9 = vector.broadcast %2 : vector<2x1xf32> to vector<2x1024xf32>
    %10 = arith.subf %0, %9 : vector<2x1024xf32>
    %11 = vector.broadcast %8 : vector<2x1xf32> to vector<2x1024xf32>
    %12 = arith.mulf %10, %11 : vector<2x1024xf32>
    %c0_3 = arith.constant 0 : index
    %c0_4 = arith.constant 0 : index
    %13 = vector.load %arg2[%c0_3, %c0_4] : memref<2x1024xf32, #tpu.memory_space<vmem>>, vector<2x1024xf32>
    tpu.vector_store %arg2[%c0_3, %c0_4], %12 {strides = array<i32>} : memref<2x1024xf32, #tpu.memory_space<vmem>>, vector<2x1024xf32>,
    return
  }
  func.func @transform_0(%arg0: i32) -> (i32, i32) {
    %c0_i32 = arith.constant 0 : i32
    %c0_i32_0 = arith.constant 0 : i32
    return %arg0, %c0_i32 : i32, i32
  }
  func.func @transform_1(%arg0: i32) -> (i32, i32) {
    %c0_i32 = arith.constant 0 : i32
    %c0_i32_0 = arith.constant 0 : i32
    return %arg0, %c0_i32 : i32, i32
  }
}

</mosaic_0001>

<llo_original>
// kernel: tpu_custom_call.1
$region0: #{tpu_custom_call.1}
  #allocation0 [shape = 'u32[]', space=smem, size = 0x4, offset = 0x4, fixed_abs, tag = 'smem constant byte address 0x4 - core index']
  #allocation1 [shape = 'u32[144,128]{1,0:T(1,128)}', space=vmem, size = 0x12000, scoped, tag = 'internal scratch']
  %s0 = inlined_call_operand.hbm [shape: f32[2,1024], index: 0, kind: input, shape index: {}]
  %s1 = inlined_call_operand.hbm [shape: f32[2,1024], index: 1, kind: output, shape index: {}]
  %s2 = sld [smem:[#allocation0]]
  $region18: #{tpu_custom_call.1} parent=0
    _
  %s4 = ssub.s32 1, %s2
  %s5 = scalar_select 0, %s4, %s2
  $region1: #{tpu_custom_call.1} parent=0
    #allocation2 [shape = 'u8[8192]{0}', space=vmem, size = 0x2000, scoped, tag = 'input window, operand 0, single buffered']
    #allocation3 [shape = 's32[1]{0}', space=sflag, size = 0x4, scoped, tag = 'scoped memory for tpu_custom_call.1']
    #allocation4 [shape = 's32[1]{0}', space=sflag, size = 0x4, scoped, tag = 'scoped memory for tpu_custom_call.1']
    #allocation5 [shape = 'u8[8192]{0}', space=vmem, size = 0x2000, scoped, tag = 'output window, operand 0, single buffered']
    %6 = vsyncpa [#allocation3], 0
    %7 = vsyncpa [#allocation4], 0
    // Predicated region
    $region2: #{tpu_custom_call.1} parent=1 // pred_check
      _
    $region3: #{tpu_custom_call.1} parent=1 // pred_check_branch
      %9 = sbr.rel (0) target = $region5
    $region4: #{tpu_custom_call.1} parent=1 // pred_region
      %s11 = ssub.s32 256, 256
      %12 = vsyncadd [#allocation3], %s11
      %s14 = sshll.u32 [#allocation2], 4
      %s15 = int_to_ptr.vmem [resolvable:$true] %s14
      %17 = dma.hbm_to_vmem [thread:$0]  %s0, 256, %s15, [#allocation3]
    $region5: #{tpu_custom_call.1} parent=1 // pred_fallthru
      _
    // Predicated region
    $region6: #{tpu_custom_call.1} parent=1 // pred_check
      _
    $region7: #{tpu_custom_call.1} parent=1 // pred_check_branch
      %19 = sbr.rel (0) target = $region9
    $region8: #{tpu_custom_call.1} parent=1 // pred_region
      %20 = dma.done [#allocation3], 256
    $region9: #{tpu_custom_call.1} parent=1 // pred_fallthru
      _
    %v21 = vld [vmem:[#allocation2] sm:$0xff]
    %v22 = vld [vmem:[#allocation2 + $0x8] sm:$0xff]
    %v25 = vcombine.high %v21, %v21
    %v27 = vunpack.c.l.s4 1983009808
    %v28 = vunpack.c.0.s8 %v27
    %v29 = vlaneseq
    %v30 = vshrl.u32 %v29, 7
    %v31 = vsub.s32 %v28, %v30
    %v32 = vrot.slane %v21, %v31
    %v34 = vunpack.c.l.s4 1983009808
    %v35 = vunpack.c.0.s8 %v34
    %v36 = vlaneseq
    %v37 = vshrl.u32 %v36, 7
    %v38 = vsub.s32 %v35, %v37
    %v39 = vrot.slane %v25, %v38
    %v40 = vcombine.high %v32, %v32
    %v41 = vcombine.high %v39, %v39
    %v42 = vcombine.high %v22, %v22
    %v44 = vunpack.c.l.s4 1983009808
    %v45 = vunpack.c.0.s8 %v44
    %v46 = vlaneseq
    %v47 = vshrl.u32 %v46, 7
    %v48 = vsub.s32 %v45, %v47
    %v49 = vrot.slane %v22, %v48
    %v51 = vunpack.c.l.s4 1983009808
    %v52 = vunpack.c.0.s8 %v51
    %v53 = vlaneseq
    %v54 = vshrl.u32 %v53, 7
    %v55 = vsub.s32 %v52, %v54
    %v56 = vrot.slane %v42, %v55
    %v57 = vcombine.high %v49, %v49
    %v58 = vcombine.high %v56, %v56
    %vm67 = vcmask 1041408
    %v68 = vsel %vm67, %v32, inf
    %v69 = vsel %vm67, %v40, inf
    %v70 = vsel %vm67, %v39, inf
    %v71 = vsel %vm67, %v41, inf
    %v72 = vsel %vm67, %v49, inf
    %v73 = vmin.f32 %v68, %v72
    %v74 = vsel %vm67, %v57, inf
    %v75 = vmin.f32 %v69, %v74
    %v76 = vsel %vm67, %v56, inf
    %v77 = vmin.f32 %v70, %v76
    %v78 = vsel %vm67, %v58, inf
    %v79 = vmin.f32 %v71, %v78
    %v80 = vmin.f32 %v73, %v75
    %v81 = vmin.f32 %v77, %v79
    %v82 = vmin.f32 %v80, %v81
    %83 = vmin.xlane.f32.xlu0 %v82
    %v84 = vpop.xlane.xlu0 %83
    %v85 = vsel %vm67, %v32, -inf
    %v86 = vsel %vm67, %v40, -inf
    %v87 = vsel %vm67, %v39, -inf
    %v88 = vsel %vm67, %v41, -inf
    %v89 = vsel %vm67, %v49, -inf
    %v90 = vmax.f32 %v85, %v89
    %v91 = vsel %vm67, %v57, -inf
    %v92 = vmax.f32 %v86, %v91
    %v93 = vsel %vm67, %v56, -inf
    %v94 = vmax.f32 %v87, %v93
    %v95 = vsel %vm67, %v58, -inf
    %v96 = vmax.f32 %v88, %v95
    %v97 = vmax.f32 %v90, %v92
    %v98 = vmax.f32 %v94, %v96
    %v99 = vmax.f32 %v97, %v98
    %100 = vmax.xlane.f32.xlu0 %v99
    %v101 = vpop.xlane.xlu0 %100
    %v102 = vsub.f32 %v101, %v84
    %v103 = vadd.f32 %v102, 1e-06
    %v104 = vrcp.pop %v103
    %v107 = vunpack.c.l.s4 269488144
    %v108 = vunpack.c.0.s8 %v107
    %v109 = vlaneseq
    %v110 = vshrl.u32 %v109, 7
    %v111 = vsub.s32 %v108, %v110
    %v112 = vrot.slane %v84, %v111
    %v114 = vsub.f32 %v21, %v112
    %v115 = vsub.f32 %v22, %v112
    %v118 = vunpack.c.l.s4 269488144
    %v119 = vunpack.c.0.s8 %v118
    %v120 = vlaneseq
    %v121 = vshrl.u32 %v120, 7
    %v122 = vsub.s32 %v119, %v121
    %v123 = vrot.slane %v104, %v122
    %v125 = vmul.f32 %v114, %v123
    %v126 = vmul.f32 %v115, %v123
    %127 = vst [vmem:[#allocation5] sm:$0xff] %v125
    %128 = vst [vmem:[#allocation5 + $0x8] sm:$0xff] %v126
    // Predicated region
    $region10: #{tpu_custom_call.1} parent=1 // pred_check
      _
    $region11: #{tpu_custom_call.1} parent=1 // pred_check_branch
      %130 = sbr.rel (0) target = $region13
    $region12: #{tpu_custom_call.1} parent=1 // pred_region
      %s132 = ssub.s32 256, 256
      %133 = vsyncadd [#allocation4], %s132
      %s135 = sshll.u32 [#allocation5], 4
      %s136 = int_to_ptr.vmem [resolvable:$true] %s135
      %138 = dma.vmem_to_hbm [thread:$0]  %s136, 256, %s1, [#allocation4]
    $region13: #{tpu_custom_call.1} parent=1 // pred_fallthru
      _
    // Predicated region
    $region14: #{tpu_custom_call.1} parent=1 // pred_check
      _
    $region15: #{tpu_custom_call.1} parent=1 // pred_check_branch
      %140 = sbr.rel (0) target = $region17
    $region16: #{tpu_custom_call.1} parent=1 // pred_region
      %141 = dma.done [#allocation4], 256
    $region17: #{tpu_custom_call.1} parent=1 // pred_fallthru
      _
    %142 = vsyncpa [#allocation3], 1
    %143 = vsyncpa [#allocation4], 1

</llo_original>
